<compile_context>
chip_gen: v6e
topology: v6e:2x2x1
jax: 0.10.0
libtpu: 0.0.40
codegen_flags: <defaults>
</compile_context>

<pallas_src>
import jax
import jax.numpy as jnp
from jax.experimental import pallas as pl
from jax.experimental.pallas import tpu as pltpu

# ---------------------------------------------------------------------------
# Model dimensions (synthetic, small, consistent with the module's __init__)
# ---------------------------------------------------------------------------
OBS_DIM    = 16
ACT_DIM    = 8
LATENT_DIM = 8
OBS_EMB    = 32   # args.obs_embedding_dim
ACT_EMB    = 16   # args.act_embedding_dim
HIDDEN     = 32   # args.hidden_size

EMB_TOTAL    = OBS_EMB + ACT_EMB        # 48 : [obs_emb | act_emb]
CONCAT_DIM   = EMB_TOTAL + LATENT_DIM   # 56 : concat fed to both heads
HEADS_HIDDEN = 2 * HIDDEN               # 64 : [h_obs | h_rew]


# ---------------------------------------------------------------------------
# Kernel: 6 small bf16 MXU matmuls (f32 accumulation), 2 ReLUs, narrow stores
# ---------------------------------------------------------------------------
def decoder_kernel(obs_ref, act_ref, lat_ref,
                   w1o_ref, w1a_ref, b1_ref,
                   w2e_ref, w2l_ref, b2_ref,
                   w3o_ref, b3o_ref, w3r_ref, b3r_ref,
                   obs_out_ref, rew_out_ref):
    f32, bf16 = jnp.float32, jnp.bfloat16

    obs = obs_ref[...].astype(bf16)    # [TB, 16]
    act = act_ref[...].astype(bf16)    # [TB, 8]
    lat = lat_ref[...].astype(bf16)    # [TB, 8]

    # --- layer 1: obs/act embeddings fused into one 48-lane slab, ReLU all ---
    z1 = (jnp.dot(obs, w1o_ref[...], preferred_element_type=f32)
          + jnp.dot(act, w1a_ref[...], preferred_element_type=f32)
          + b1_ref[...])                                     # [TB, 48]
    a1 = jnp.maximum(z1, 0.0).astype(bf16)

    # --- layer 2: both heads' hidden layers column-fused; latents enter here --
    h = jnp.maximum(
        jnp.dot(a1, w2e_ref[...], preferred_element_type=f32)
        + jnp.dot(lat, w2l_ref[...], preferred_element_type=f32)
        + b2_ref[...],
        0.0).astype(bf16)                                    # [TB, 64]

    # --- layer 3: separate narrow outputs (no padded slab, no lane slicing) ---
    obs_out_ref[...] = (jnp.dot(h, w3o_ref[...], preferred_element_type=f32)
                        + b3o_ref[...]).astype(obs_out_ref.dtype)   # [TB, 16]
    rew_out_ref[...] = (jnp.dot(h, w3r_ref[...], preferred_element_type=f32)
                        + b3r_ref[...]).astype(rew_out_ref.dtype)   # [TB, 1]


# ---------------------------------------------------------------------------
# Host-side weight fusion (done once, outside the kernel)
# ---------------------------------------------------------------------------
def fuse_params(params):
    (w1o, b1o, w1a, b1a, w2o, b2o, w3o, b3o, w2r, b2r, w3r, b3r) = params
    f32, bf16 = jnp.float32, jnp.bfloat16

    # layer 1: zero-column-padded so obs/act matmuls land in disjoint lanes
    w1o_ext = jnp.zeros((OBS_DIM, EMB_TOTAL), f32).at[:, :OBS_EMB].set(w1o)
    w1a_ext = jnp.zeros((ACT_DIM, EMB_TOTAL), f32).at[:, OBS_EMB:].set(w1a)
    b1 = jnp.concatenate([b1o, b1a], axis=1)                 # [1, 48]

    # layer 2: both heads column-fused, then split emb-rows vs latent-rows
    w2_full = jnp.concatenate([w2o, w2r], axis=1)            # [56, 64]
    w2e = w2_full[:EMB_TOTAL, :]                             # [48, 64]
    w2l = w2_full[EMB_TOTAL:, :]                             # [8, 64]
    b2 = jnp.concatenate([b2o, b2r], axis=1)                 # [1, 64]

    # layer 3: per-head output weights, zero-row-padded to the fused hidden dim
    w3o_pad = jnp.zeros((HEADS_HIDDEN, OBS_DIM), f32).at[:HIDDEN, :].set(w3o)
    w3r_pad = jnp.zeros((HEADS_HIDDEN, 1), f32).at[HIDDEN:, :].set(w3r)

    return (w1o_ext.astype(bf16), w1a_ext.astype(bf16), b1.astype(f32),
            w2e.astype(bf16), w2l.astype(bf16), b2.astype(f32),
            w3o_pad.astype(bf16), b3o.astype(f32),
            w3r_pad.astype(bf16), b3r.astype(f32))


def _pick_tile(B):
    # Modest batches: one full-batch tile (TB == B satisfies the layout rule).
    # Large batches: 128-aligned tiles up to 1024 rows with >= 2 grid steps so
    # megacore (v7x) shards; per-step VMEM stays tiny on every generation.
    if B <= 256:
        return B
    tb = (B // 2) // 128 * 128
    return max(128, min(1024, tb))


# ---------------------------------------------------------------------------
# Wrapper
# ---------------------------------------------------------------------------
def decoder_forward(latents, curr_obs, curr_act, fused_params):
    B = curr_obs.shape[0]
    TB = _pick_tile(B)
    grid = (pl.cdiv(B, TB),)          # partial last tile handled by Pallas

    (w1o, w1a, b1, w2e, w2l, b2, w3o, b3o, w3r, b3r) = fused_params
    weights = (w1o, w1a, b1, w2e, w2l, b2, w3o, b3o, w3r, b3r)

    def bspec(feat):                  # batch-tiled tensors (full last dim)
        return pl.BlockSpec((TB, feat), lambda i: (i, 0))

    def wspec(arr):                   # weights: full array, resident across grid
        return pl.BlockSpec(arr.shape, lambda i: (0, 0))

    in_specs = ([bspec(OBS_DIM), bspec(ACT_DIM), bspec(LATENT_DIM)]
                + [wspec(w) for w in weights])
    out_specs = (bspec(OBS_DIM), bspec(1))
    out_shape = (jax.ShapeDtypeStruct((B, OBS_DIM), jnp.float32),
                 jax.ShapeDtypeStruct((B, 1), jnp.float32))

    flops = 2 * B * (OBS_DIM * EMB_TOTAL + ACT_DIM * EMB_TOTAL
                     + EMB_TOTAL * HEADS_HIDDEN + LATENT_DIM * HEADS_HIDDEN
                     + HEADS_HIDDEN * OBS_DIM + HEADS_HIDDEN * 1)
    weight_bytes = sum(int(w.size) * w.dtype.itemsize for w in weights)
    bytes_accessed = (B * (OBS_DIM + ACT_DIM + LATENT_DIM) * 4
                      + B * (OBS_DIM + 1) * 4
                      + weight_bytes)

    fn = pl.pallas_call(
        decoder_kernel,
        out_shape=out_shape,
        grid_spec=pl.GridSpec(grid=grid, in_specs=in_specs, out_specs=out_specs),
        compiler_params=pltpu.CompilerParams(
            dimension_semantics=("parallel",)),
        cost_estimate=pl.CostEstimate(flops=flops, transcendentals=0,
                                      bytes_accessed=bytes_accessed),
    )
    pred_next_obs, pred_reward = fn(curr_obs, curr_act, latents, *weights)
    return pred_next_obs, pred_reward


# ---------------------------------------------------------------------------
# Parameter init (shapes match the PyTorch module) and pure-JAX reference
# ---------------------------------------------------------------------------
def init_params(key):
    ks = jax.random.split(key, 12)

    def lin(kw, kb, fan_in, fan_out):
        scale = 1.0 / jnp.sqrt(fan_in)
        w = jax.random.uniform(kw, (fan_in, fan_out), jnp.float32, -scale, scale)
        b = jax.random.uniform(kb, (1, fan_out), jnp.float32, -scale, scale)
        return w, b

    w1o, b1o = lin(ks[0], ks[1], OBS_DIM, OBS_EMB)          # fc1_obs
    w1a, b1a = lin(ks[2], ks[3], ACT_DIM, ACT_EMB)          # fc1_act
    w2o, b2o = lin(ks[4], ks[5], CONCAT_DIM, HIDDEN)        # next_obs_pred[0]
    w3o, b3o = lin(ks[6], ks[7], HIDDEN, OBS_DIM)           # next_obs_pred[2]
    w2r, b2r = lin(ks[8], ks[9], CONCAT_DIM, HIDDEN)        # reward_pred[0]
    w3r, b3r = lin(ks[10], ks[11], HIDDEN, 1)               # reward_pred[2]
    return (w1o, b1o, w1a, b1a, w2o, b2o, w3o, b3o, w2r, b2r, w3r, b3r)


def decoder_reference(latents, curr_obs, curr_act, params):
    (w1o, b1o, w1a, b1a, w2o, b2o, w3o, b3o, w2r, b2r, w3r, b3r) = params
    obs_emb = jnp.maximum(curr_obs @ w1o + b1o, 0.0)
    act_emb = jnp.maximum(curr_act @ w1a + b1a, 0.0)
    concat = jnp.concatenate([obs_emb, act_emb, latents], axis=-1)
    pred_next_obs = jnp.maximum(concat @ w2o + b2o, 0.0) @ w3o + b3o
    pred_reward = jnp.maximum(concat @ w2r + b2r, 0.0) @ w3r + b3r
    return pred_next_obs, pred_reward


# ---------------------------------------------------------------------------
if __name__ == "__main__":
    key = jax.random.PRNGKey(0)
    k_par, k_data = jax.random.split(key)
    params = init_params(k_par)
    fused = fuse_params(params)

    ok = True
    # 8   : single full-batch tile (grid=1)
    # 512 : multi-step grid, tile divides batch exactly
    # 600 : multi-step grid with a partial last tile (cdiv path)
    for B in (8, 512, 600):
        k_lat, k_obs, k_act, k_data = jax.random.split(k_data, 4)
        latents  = jax.random.normal(k_lat, (B, LATENT_DIM), jnp.float32)
        curr_obs = jax.random.normal(k_obs, (B, OBS_DIM), jnp.float32)
        curr_act = jax.random.normal(k_act, (B, ACT_DIM), jnp.float32)

        pred_next_obs, pred_reward = decoder_forward(latents, curr_obs,
                                                     curr_act, fused)
        jax.block_until_ready(pred_next_obs)
        jax.block_until_ready(pred_reward)

        ref_obs, ref_rew = decoder_reference(latents, curr_obs, curr_act, params)
        ok &= pred_next_obs.shape == (B, OBS_DIM)
        ok &= pred_reward.shape == (B, 1)
        # bf16 weights/activations with f32 accumulation -> looser tolerances
        ok &= bool(jnp.allclose(pred_next_obs, ref_obs, atol=3e-2, rtol=3e-2))
        ok &= bool(jnp.allclose(pred_reward, ref_rew, atol=3e-2, rtol=3e-2))

    assert ok
    print("KERNEL_OK")
</pallas_src>

<mosaic_0001>
module attributes {stable_mosaic.version = 11 : i64} {
  func.func @decoder_kernel(%arg0: i32, %arg1: memref<8x16xf32, #tpu.memory_space<vmem>>, %arg2: memref<8x8xf32, #tpu.memory_space<vmem>>, %arg3: memref<8x8xf32, #tpu.memory_space<vmem>>, %arg4: memref<16x48xbf16, #tpu.memory_space<vmem>>, %arg5: memref<8x48xbf16, #tpu.memory_space<vmem>>, %arg6: memref<1x48xf32, #tpu.memory_space<vmem>>, %arg7: memref<48x64xbf16, #tpu.memory_space<vmem>>, %arg8: memref<8x64xbf16, #tpu.memory_space<vmem>>, %arg9: memref<1x64xf32, #tpu.memory_space<vmem>>, %arg10: memref<64x16xbf16, #tpu.memory_space<vmem>>, %arg11: memref<1x16xf32, #tpu.memory_space<vmem>>, %arg12: memref<64x1xbf16, #tpu.memory_space<vmem>>, %arg13: memref<1x1xf32, #tpu.memory_space<vmem>>, %arg14: memref<8x16xf32, #tpu.memory_space<vmem>>, %arg15: memref<8x1xf32, #tpu.memory_space<vmem>>) attributes {dimension_semantics = [#tpu.dimension_semantics<parallel>], iteration_bounds = array<i64: 1>, scalar_prefetch = 0 : i64, scratch_operands = 0 : i64, tpu.core_type = #tpu.core_type<tc>, window_params = [{transform_indices = @transform_0, window_bounds = array<i64: 8, 16>}, {transform_indices = @transform_1, window_bounds = array<i64: 8, 8>}, {transform_indices = @transform_2, window_bounds = array<i64: 8, 8>}, {pipeline_mode = #tpu.pipeline_mode<synchronous>, transform_indices = @transform_3, window_bounds = array<i64: 16, 48>}, {pipeline_mode = #tpu.pipeline_mode<synchronous>, transform_indices = @transform_4, window_bounds = array<i64: 8, 48>}, {pipeline_mode = #tpu.pipeline_mode<synchronous>, transform_indices = @transform_5, window_bounds = array<i64: 1, 48>}, {pipeline_mode = #tpu.pipeline_mode<synchronous>, transform_indices = @transform_6, window_bounds = array<i64: 48, 64>}, {pipeline_mode = #tpu.pipeline_mode<synchronous>, transform_indices = @transform_7, window_bounds = array<i64: 8, 64>}, {pipeline_mode = #tpu.pipeline_mode<synchronous>, transform_indices = @transform_8, window_bounds = array<i64: 1, 64>}, {pipeline_mode = #tpu.pipeline_mode<synchronous>, transform_indices = @transform_9, window_bounds = array<i64: 64, 16>}, {pipeline_mode = #tpu.pipeline_mode<synchronous>, transform_indices = @transform_10, window_bounds = array<i64: 1, 16>}, {pipeline_mode = #tpu.pipeline_mode<synchronous>, transform_indices = @transform_11, window_bounds = array<i64: 64, 1>}, {pipeline_mode = #tpu.pipeline_mode<synchronous>, transform_indices = @transform_12, window_bounds = array<i64: 1, 1>}, {transform_indices = @transform_13, window_bounds = array<i64: 8, 16>}, {transform_indices = @transform_14, window_bounds = array<i64: 8, 1>}]} {
    %c0 = arith.constant 0 : index
    %c0_0 = arith.constant 0 : index
    %0 = vector.load %arg1[%c0, %c0_0] : memref<8x16xf32, #tpu.memory_space<vmem>>, vector<8x16xf32>
    %1 = arith.truncf %0 : vector<8x16xf32> to vector<8x16xbf16>
    %c0_1 = arith.constant 0 : index
    %c0_2 = arith.constant 0 : index
    %2 = vector.load %arg2[%c0_1, %c0_2] : memref<8x8xf32, #tpu.memory_space<vmem>>, vector<8x8xf32>
    %3 = arith.truncf %2 : vector<8x8xf32> to vector<8x8xbf16>
    %c0_3 = arith.constant 0 : index
    %c0_4 = arith.constant 0 : index
    %4 = vector.load %arg3[%c0_3, %c0_4] : memref<8x8xf32, #tpu.memory_space<vmem>>, vector<8x8xf32>
    %5 = arith.truncf %4 : vector<8x8xf32> to vector<8x8xbf16>
    %c0_5 = arith.constant 0 : index
    %c0_6 = arith.constant 0 : index
    %6 = vector.load %arg4[%c0_5, %c0_6] : memref<16x48xbf16, #tpu.memory_space<vmem>>, vector<16x48xbf16>
    %cst = arith.constant dense<0.000000e+00> : vector<8x48xf32>
    %7 = tpu.matmul %1, %6, %cst {dimension_numbers = #tpu.dot_dimension_numbers<[1], [0], [0], [1], [0, 0, 1, 1], [], []>} : vector<8x16xbf16>, vector<16x48xbf16>, vector<8x48xf32> -> vector<8x48xf32>
    %c0_7 = arith.constant 0 : index
    %c0_8 = arith.constant 0 : index
    %8 = vector.load %arg5[%c0_7, %c0_8] : memref<8x48xbf16, #tpu.memory_space<vmem>>, vector<8x48xbf16>
    %cst_9 = arith.constant dense<0.000000e+00> : vector<8x48xf32>
    %9 = tpu.matmul %3, %8, %cst_9 {dimension_numbers = #tpu.dot_dimension_numbers<[1], [0], [0], [1], [0, 0, 1, 1], [], []>} : vector<8x8xbf16>, vector<8x48xbf16>, vector<8x48xf32> -> vector<8x48xf32>
    %10 = arith.addf %7, %9 : vector<8x48xf32>
    %c0_10 = arith.constant 0 : index
    %c0_11 = arith.constant 0 : index
    %11 = vector.load %arg6[%c0_10, %c0_11] : memref<1x48xf32, #tpu.memory_space<vmem>>, vector<1x48xf32>
    %12 = vector.broadcast %11 : vector<1x48xf32> to vector<8x48xf32>
    %13 = arith.addf %10, %12 : vector<8x48xf32>
    %cst_12 = arith.constant 0.000000e+00 : f32
    %14 = vector.broadcast %cst_12 : f32 to vector<8x48xf32>
    %15 = arith.maximumf %13, %14 : vector<8x48xf32>
    %16 = arith.truncf %15 : vector<8x48xf32> to vector<8x48xbf16>
    %c0_13 = arith.constant 0 : index
    %c0_14 = arith.constant 0 : index
    %17 = vector.load %arg7[%c0_13, %c0_14] : memref<48x64xbf16, #tpu.memory_space<vmem>>, vector<48x64xbf16>
    %cst_15 = arith.constant dense<0.000000e+00> : vector<8x64xf32>
    %18 = tpu.matmul %16, %17, %cst_15 {dimension_numbers = #tpu.dot_dimension_numbers<[1], [0], [0], [1], [0, 0, 1, 1], [], []>} : vector<8x48xbf16>, vector<48x64xbf16>, vector<8x64xf32> -> vector<8x64xf32>
    %c0_16 = arith.constant 0 : index
    %c0_17 = arith.constant 0 : index
    %19 = vector.load %arg8[%c0_16, %c0_17] : memref<8x64xbf16, #tpu.memory_space<vmem>>, vector<8x64xbf16>
    %cst_18 = arith.constant dense<0.000000e+00> : vector<8x64xf32>
    %20 = tpu.matmul %5, %19, %cst_18 {dimension_numbers = #tpu.dot_dimension_numbers<[1], [0], [0], [1], [0, 0, 1, 1], [], []>} : vector<8x8xbf16>, vector<8x64xbf16>, vector<8x64xf32> -> vector<8x64xf32>
    %21 = arith.addf %18, %20 : vector<8x64xf32>
    %c0_19 = arith.constant 0 : index
    %c0_20 = arith.constant 0 : index
    %22 = vector.load %arg9[%c0_19, %c0_20] : memref<1x64xf32, #tpu.memory_space<vmem>>, vector<1x64xf32>
    %23 = vector.broadcast %22 : vector<1x64xf32> to vector<8x64xf32>
    %24 = arith.addf %21, %23 : vector<8x64xf32>
    %cst_21 = arith.constant 0.000000e+00 : f32
    %25 = vector.broadcast %cst_21 : f32 to vector<8x64xf32>
    %26 = arith.maximumf %24, %25 : vector<8x64xf32>
    %27 = arith.truncf %26 : vector<8x64xf32> to vector<8x64xbf16>
    %c0_22 = arith.constant 0 : index
    %c0_23 = arith.constant 0 : index
    %28 = vector.load %arg10[%c0_22, %c0_23] : memref<64x16xbf16, #tpu.memory_space<vmem>>, vector<64x16xbf16>
    %cst_24 = arith.constant dense<0.000000e+00> : vector<8x16xf32>
    %29 = tpu.matmul %27, %28, %cst_24 {dimension_numbers = #tpu.dot_dimension_numbers<[1], [0], [0], [1], [0, 0, 1, 1], [], []>} : vector<8x64xbf16>, vector<64x16xbf16>, vector<8x16xf32> -> vector<8x16xf32>
    %c0_25 = arith.constant 0 : index
    %c0_26 = arith.constant 0 : index
    %30 = vector.load %arg11[%c0_25, %c0_26] : memref<1x16xf32, #tpu.memory_space<vmem>>, vector<1x16xf32>
    %31 = vector.broadcast %30 : vector<1x16xf32> to vector<8x16xf32>
    %32 = arith.addf %29, %31 : vector<8x16xf32>
    %c0_27 = arith.constant 0 : index
    %c0_28 = arith.constant 0 : index
    %33 = vector.load %arg14[%c0_27, %c0_28] : memref<8x16xf32, #tpu.memory_space<vmem>>, vector<8x16xf32>
    tpu.vector_store %arg14[%c0_27, %c0_28], %32 {strides = array<i32>} : memref<8x16xf32, #tpu.memory_space<vmem>>, vector<8x16xf32>,
    %c0_29 = arith.constant 0 : index
    %c0_30 = arith.constant 0 : index
    %34 = vector.load %arg12[%c0_29, %c0_30] : memref<64x1xbf16, #tpu.memory_space<vmem>>, vector<64x1xbf16>
    %cst_31 = arith.constant dense<0.000000e+00> : vector<8x1xf32>
    %35 = tpu.matmul %27, %34, %cst_31 {dimension_numbers = #tpu.dot_dimension_numbers<[1], [0], [0], [1], [0, 0, 1, 1], [], []>} : vector<8x64xbf16>, vector<64x1xbf16>, vector<8x1xf32> -> vector<8x1xf32>
    %c0_32 = arith.constant 0 : index
    %c0_33 = arith.constant 0 : index
    %36 = vector.load %arg13[%c0_32, %c0_33] : memref<1x1xf32, #tpu.memory_space<vmem>>, vector<1x1xf32>
    %37 = vector.broadcast %36 : vector<1x1xf32> to vector<8x1xf32>
    %38 = arith.addf %35, %37 : vector<8x1xf32>
    %c0_34 = arith.constant 0 : index
    %c0_35 = arith.constant 0 : index
    %39 = vector.load %arg15[%c0_34, %c0_35] : memref<8x1xf32, #tpu.memory_space<vmem>>, vector<8x1xf32>
    tpu.vector_store %arg15[%c0_34, %c0_35], %38 {strides = array<i32>} : memref<8x1xf32, #tpu.memory_space<vmem>>, vector<8x1xf32>,
    return
  }
  func.func @transform_0(%arg0: i32) -> (i32, i32) {
    %c0_i32 = arith.constant 0 : i32
    %c0_i32_0 = arith.constant 0 : i32
    return %arg0, %c0_i32 : i32, i32
  }
  func.func @transform_1(%arg0: i32) -> (i32, i32) {
    %c0_i32 = arith.constant 0 : i32
    %c0_i32_0 = arith.constant 0 : i32
    return %arg0, %c0_i32 : i32, i32
  }
  func.func @transform_2(%arg0: i32) -> (i32, i32) {
    %c0_i32 = arith.constant 0 : i32
    %c0_i32_0 = arith.constant 0 : i32
    return %arg0, %c0_i32 : i32, i32
  }
  func.func @transform_3(%arg0: i32) -> (i32, i32) {
    %c0_i32 = arith.constant 0 : i32
    %c0_i32_0 = arith.constant 0 : i32
    %c0_i32_1 = arith.constant 0 : i32
    return %c0_i32, %c0_i32_0 : i32, i32
  }
  func.func @transform_4(%arg0: i32) -> (i32, i32) {
    %c0_i32 = arith.constant 0 : i32
    %c0_i32_0 = arith.constant 0 : i32
    %c0_i32_1 = arith.constant 0 : i32
    return %c0_i32, %c0_i32_0 : i32, i32
  }
  func.func @transform_5(%arg0: i32) -> (i32, i32) {
    %c0_i32 = arith.constant 0 : i32
    %c0_i32_0 = arith.constant 0 : i32
    %c0_i32_1 = arith.constant 0 : i32
    return %c0_i32, %c0_i32_0 : i32, i32
  }
  func.func @transform_6(%arg0: i32) -> (i32, i32) {
    %c0_i32 = arith.constant 0 : i32
    %c0_i32_0 = arith.constant 0 : i32
    %c0_i32_1 = arith.constant 0 : i32
    return %c0_i32, %c0_i32_0 : i32, i32
  }
  func.func @transform_7(%arg0: i32) -> (i32, i32) {
    %c0_i32 = arith.constant 0 : i32
    %c0_i32_0 = arith.constant 0 : i32
    %c0_i32_1 = arith.constant 0 : i32
    return %c0_i32, %c0_i32_0 : i32, i32
  }
  func.func @transform_8(%arg0: i32) -> (i32, i32) {
    %c0_i32 = arith.constant 0 : i32
    %c0_i32_0 = arith.constant 0 : i32
    %c0_i32_1 = arith.constant 0 : i32
    return %c0_i32, %c0_i32_0 : i32, i32
  }
  func.func @transform_9(%arg0: i32) -> (i32, i32) {
    %c0_i32 = arith.constant 0 : i32
    %c0_i32_0 = arith.constant 0 : i32
    %c0_i32_1 = arith.constant 0 : i32
    return %c0_i32, %c0_i32_0 : i32, i32
  }
  func.func @transform_10(%arg0: i32) -> (i32, i32) {
    %c0_i32 = arith.constant 0 : i32
    %c0_i32_0 = arith.constant 0 : i32
    %c0_i32_1 = arith.constant 0 : i32
    return %c0_i32, %c0_i32_0 : i32, i32
  }
  func.func @transform_11(%arg0: i32) -> (i32, i32) {
    %c0_i32 = arith.constant 0 : i32
    %c0_i32_0 = arith.constant 0 : i32
    %c0_i32_1 = arith.constant 0 : i32
    return %c0_i32, %c0_i32_0 : i32, i32
  }
  func.func @transform_12(%arg0: i32) -> (i32, i32) {
    %c0_i32 = arith.constant 0 : i32
    %c0_i32_0 = arith.constant 0 : i32
    %c0_i32_1 = arith.constant 0 : i32
    return %c0_i32, %c0_i32_0 : i32, i32
  }
  func.func @transform_13(%arg0: i32) -> (i32, i32) {
    %c0_i32 = arith.constant 0 : i32
    %c0_i32_0 = arith.constant 0 : i32
    return %arg0, %c0_i32 : i32, i32
  }
  func.func @transform_14(%arg0: i32) -> (i32, i32) {
    %c0_i32 = arith.constant 0 : i32
    %c0_i32_0 = arith.constant 0 : i32
    return %arg0, %c0_i32 : i32, i32
  }
}

</mosaic_0001>

<llo_original>
// kernel: tpu_custom_call.1
$region0: #{tpu_custom_call.1}
  #allocation0 [shape = 'u32[]', space=smem, size = 0x4, offset = 0x4, fixed_abs, tag = 'smem constant byte address 0x4 - core index']
  #allocation1 [shape = 'u32[144,128]{1,0:T(1,128)}', space=vmem, size = 0x12000, scoped, tag = 'internal scratch']
  #allocation2 [shape = 'f32[1,1]{1,0:T(1,128)S(1)}', space=vmem, size = 0x200, scoped, tag = 'scoped memory for tpu_custom_call.1']
  %s0 = inlined_call_operand.vmem [shape: f32[8,16], index: 0, kind: input, shape index: {}]
  %s1 = inlined_call_operand.vmem [shape: f32[8,8], index: 1, kind: input, shape index: {}]
  %s2 = inlined_call_operand.vmem [shape: f32[8,8], index: 2, kind: input, shape index: {}]
  %s3 = inlined_call_operand.vmem [shape: bf16[16,48], index: 3, kind: input, shape index: {}]
  %s4 = inlined_call_operand.vmem [shape: bf16[8,48], index: 4, kind: input, shape index: {}]
  %s5 = inlined_call_operand.vmem [shape: f32[1,48], index: 5, kind: input, shape index: {}]
  %s6 = inlined_call_operand.vmem [shape: bf16[48,64], index: 6, kind: input, shape index: {}]
  %s7 = inlined_call_operand.vmem [shape: bf16[8,64], index: 7, kind: input, shape index: {}]
  %s8 = inlined_call_operand.vmem [shape: f32[1,64], index: 8, kind: input, shape index: {}]
  %s9 = inlined_call_operand.vmem [shape: bf16[64,16], index: 9, kind: input, shape index: {}]
  %s10 = inlined_call_operand.vmem [shape: f32[1,16], index: 10, kind: input, shape index: {}]
  %s11 = inlined_call_operand.vmem [shape: bf16[64,1], index: 11, kind: input, shape index: {}]
  %s12 = inlined_call_operand.<no memory space> [shape: f32[1,1], index: 12, kind: input, shape index: {}]
  %s13 = inlined_call_operand.hbm [shape: f32[8,16], index: 13, kind: output, shape index: {0}]
  %s14 = inlined_call_operand.vmem [shape: f32[8,1], index: 14, kind: output, shape index: {1}]
  %15 = xla_tuple %s13, %s14
  %s16 = sld [smem:[#allocation0]]
  $region70: #{tpu_custom_call.1} parent=0
    _
  %s18 = ssub.s32 1, %s16
  %s19 = scalar_select 0, %s18, %s16
  %v20 = vstv %s12
  %21 = vst [vmem:[#allocation2] sm:$0x1] %v20
  $region1: #{tpu_custom_call.1} parent=0
    #allocation3 [shape = 'u8[4096]{0}', space=vmem, size = 0x1000, scoped, tag = 'output window, operand 0, single buffered']
    #allocation4 [shape = 's32[1]{0}', space=sflag, size = 0x4, scoped, tag = 'scoped memory for tpu_custom_call.1']
    %22 = vsyncpa [#allocation4], 0
    // Predicated region
    $region2: #{tpu_custom_call.1} parent=1 // pred_check
      _
    $region3: #{tpu_custom_call.1} parent=1 // pred_check_branch
      %24 = sbr.rel (0) target = $region5
    $region4: #{tpu_custom_call.1} parent=1 // pred_region
      _
    $region5: #{tpu_custom_call.1} parent=1 // pred_fallthru
      _
    // Predicated region
    $region6: #{tpu_custom_call.1} parent=1 // pred_check
      _
    $region7: #{tpu_custom_call.1} parent=1 // pred_check_branch
      %26 = sbr.rel (0) target = $region9
    $region8: #{tpu_custom_call.1} parent=1 // pred_region
      _
    $region9: #{tpu_custom_call.1} parent=1 // pred_fallthru
      _
    // Predicated region
    $region10: #{tpu_custom_call.1} parent=1 // pred_check
      _
    $region11: #{tpu_custom_call.1} parent=1 // pred_check_branch
      %28 = sbr.rel (0) target = $region13
    $region12: #{tpu_custom_call.1} parent=1 // pred_region
      _
    $region13: #{tpu_custom_call.1} parent=1 // pred_fallthru
      _
    // Predicated region
    $region14: #{tpu_custom_call.1} parent=1 // pred_check
      _
    $region15: #{tpu_custom_call.1} parent=1 // pred_check_branch
      %30 = sbr.rel (0) target = $region17
    $region16: #{tpu_custom_call.1} parent=1 // pred_region
      _
    $region17: #{tpu_custom_call.1} parent=1 // pred_fallthru
      _
    // Predicated region
    $region18: #{tpu_custom_call.1} parent=1 // pred_check
      _
    $region19: #{tpu_custom_call.1} parent=1 // pred_check_branch
      %32 = sbr.rel (0) target = $region21
    $region20: #{tpu_custom_call.1} parent=1 // pred_region
      _
    $region21: #{tpu_custom_call.1} parent=1 // pred_fallthru
      _
    // Predicated region
    $region22: #{tpu_custom_call.1} parent=1 // pred_check
      _
    $region23: #{tpu_custom_call.1} parent=1 // pred_check_branch
      %34 = sbr.rel (0) target = $region25
    $region24: #{tpu_custom_call.1} parent=1 // pred_region
      _
    $region25: #{tpu_custom_call.1} parent=1 // pred_fallthru
      _
    // Predicated region
    $region26: #{tpu_custom_call.1} parent=1 // pred_check
      _
    $region27: #{tpu_custom_call.1} parent=1 // pred_check_branch
      %36 = sbr.rel (0) target = $region29
    $region28: #{tpu_custom_call.1} parent=1 // pred_region
      _
    $region29: #{tpu_custom_call.1} parent=1 // pred_fallthru
      _
    // Predicated region
    $region30: #{tpu_custom_call.1} parent=1 // pred_check
      _
    $region31: #{tpu_custom_call.1} parent=1 // pred_check_branch
      %38 = sbr.rel (0) target = $region33
    $region32: #{tpu_custom_call.1} parent=1 // pred_region
      _
    $region33: #{tpu_custom_call.1} parent=1 // pred_fallthru
      _
    // Predicated region
    $region34: #{tpu_custom_call.1} parent=1 // pred_check
      _
    $region35: #{tpu_custom_call.1} parent=1 // pred_check_branch
      %40 = sbr.rel (0) target = $region37
    $region36: #{tpu_custom_call.1} parent=1 // pred_region
      _
    $region37: #{tpu_custom_call.1} parent=1 // pred_fallthru
      _
    // Predicated region
    $region38: #{tpu_custom_call.1} parent=1 // pred_check
      _
    $region39: #{tpu_custom_call.1} parent=1 // pred_check_branch
      %42 = sbr.rel (0) target = $region41
    $region40: #{tpu_custom_call.1} parent=1 // pred_region
      _
    $region41: #{tpu_custom_call.1} parent=1 // pred_fallthru
      _
    // Predicated region
    $region42: #{tpu_custom_call.1} parent=1 // pred_check
      _
    $region43: #{tpu_custom_call.1} parent=1 // pred_check_branch
      %44 = sbr.rel (0) target = $region45
    $region44: #{tpu_custom_call.1} parent=1 // pred_region
      _
    $region45: #{tpu_custom_call.1} parent=1 // pred_fallthru
      _
    // Predicated region
    $region46: #{tpu_custom_call.1} parent=1 // pred_check
      _
    $region47: #{tpu_custom_call.1} parent=1 // pred_check_branch
      %46 = sbr.rel (0) target = $region49
    $region48: #{tpu_custom_call.1} parent=1 // pred_region
      _
    $region49: #{tpu_custom_call.1} parent=1 // pred_fallthru
      _
    // Predicated region
    $region50: #{tpu_custom_call.1} parent=1 // pred_check
      _
    $region51: #{tpu_custom_call.1} parent=1 // pred_check_branch
      %48 = sbr.rel (0) target = $region53
    $region52: #{tpu_custom_call.1} parent=1 // pred_region
      _
    $region53: #{tpu_custom_call.1} parent=1 // pred_fallthru
      _
    %v50 = vld [vmem:[%s0] sm:$0xff]
    %v51 = vpack.c.bf16 %v50, %v50
    %v52 = vld [vmem:[%s1] sm:$0xff]
    %v53 = vpack.c.bf16 %v52, %v52
    %v54 = vld [vmem:[%s2] sm:$0xff]
    %v55 = vpack.c.bf16 %v54, %v54
    %v56 = vld [vmem:[%s3] sm:$0xf]
    %v57 = vld [vmem:[%s3 + $0x4] sm:$0xf]
    %v58 = vld [vmem:[%s4] sm:$0xf]
    %vm59 = vcmask 64512
    %v61 = vsel %vm59, %v53, 0
    %vm63 = vcmask 1043456
    %v65 = vsel %vm63, %v58, 0
    %67 = vmatprep.subr.bf16.mxu0 0
    %68 = vmatpush1.bf16.msra.mxu0 0
    %69 = vmatprep.subr.bf16.mxu0 0
    %70 = vmatpush1.bf16.msra.mxu0 0
    %71 = vmatprep.subr.bf16.mxu0 0
    %72 = vmatpush1.bf16.msra.mxu0 0
    %73 = vmatprep.subr.bf16.mxu0 0
    %74 = vmatpush1.bf16.msra.mxu0 0
    %75 = vmatprep.subr.bf16.mxu0 0
    %76 = vmatpush1.bf16.msra.mxu0 0
    %77 = vmatprep.subr.bf16.mxu0 0
    %78 = vmatpush1.bf16.msra.mxu0 0
    %79 = vmatprep.subr.bf16.mxu0 0
    %80 = vmatpush1.bf16.msra.mxu0 0
    %81 = vmatprep.subr.bf16.mxu0 0
    %82 = vmatpush1.bf16.msra.mxu0 %v65
    %83 = vmatprep.subr.bf16.mxu0 0
    %84 = vmatpush2.bf16.msra.mxu0 0
    %85 = vmatprep.subr.bf16.mxu0 0
    %86 = vmatpush2.bf16.msra.mxu0 0
    %87 = vmatprep.subr.bf16.mxu0 0
    %88 = vmatpush2.bf16.msra.mxu0 0
    %89 = vmatprep.subr.bf16.mxu0 0
    %90 = vmatpush2.bf16.msra.mxu0 0
    %91 = vmatprep.subr.bf16.mxu0 0
    %92 = vmatpush2.bf16.msra.mxu0 0
    %93 = vmatprep.subr.bf16.mxu0 0
    %94 = vmatpush2.bf16.msra.mxu0 0
    %95 = vmatprep.subr.bf16.mxu0 0
    %96 = vmatpush2.bf16.msra.mxu0 0
    %97 = vmatprep.subr.bf16.mxu0 0
    %98 = vmatpush2.bf16.msra.mxu0 0
    %99 = vmatprep.mubr.bf16.mxu0 0
    %100 = vmatmul.mubr.bf16.gmra.mxu0 %v61
    %v101 = vpop.f32.mrf.mxu0
    %v102 = vadd.f32 0.0, %v101
    %v103 = vpop.f32.mrf.mxu0
    %v104 = vpop.f32.mrf.mxu0
    %v105 = vpop.f32.mrf.mxu0
    %106 = vdwg.mxu0
    %v109 = vunpack.c.l.b16 %v56
    %v110 = vunpack.c.l.b16 %v57
    %v111 = vpack.c.b16 %v110, %v109
    %vm113 = vcmask 130048
    %v115 = vsel %vm113, %v51, 0
    %117 = vmatprep.subr.bf16.mxu0 0
    %118 = vmatpush1.bf16.msra.mxu0 0
    %119 = vmatprep.subr.bf16.mxu0 0
    %120 = vmatpush1.bf16.msra.mxu0 0
    %121 = vmatprep.subr.bf16.mxu0 0
    %122 = vmatpush1.bf16.msra.mxu0 0
    %123 = vmatprep.subr.bf16.mxu0 0
    %124 = vmatpush1.bf16.msra.mxu0 0
    %125 = vmatprep.subr.bf16.mxu0 0
    %126 = vmatpush1.bf16.msra.mxu0 0
    %127 = vmatprep.subr.bf16.mxu0 0
    %128 = vmatpush1.bf16.msra.mxu0 0
    %129 = vmatprep.subr.bf16.mxu0 0
    %130 = vmatpush1.bf16.msra.mxu0 0
    %131 = vmatprep.subr.bf16.mxu0 0
    %132 = vmatpush1.bf16.msra.mxu0 %v111
    %133 = vmatprep.subr.bf16.mxu0 0
    %134 = vmatpush2.bf16.msra.mxu0 0
    %135 = vmatprep.subr.bf16.mxu0 0
    %136 = vmatpush2.bf16.msra.mxu0 0
    %137 = vmatprep.subr.bf16.mxu0 0
    %138 = vmatpush2.bf16.msra.mxu0 0
    %139 = vmatprep.subr.bf16.mxu0 0
    %140 = vmatpush2.bf16.msra.mxu0 0
    %141 = vmatprep.subr.bf16.mxu0 0
    %142 = vmatpush2.bf16.msra.mxu0 0
    %143 = vmatprep.subr.bf16.mxu0 0
    %144 = vmatpush2.bf16.msra.mxu0 0
    %145 = vmatprep.subr.bf16.mxu0 0
    %146 = vmatpush2.bf16.msra.mxu0 0
    %147 = vmatprep.subr.bf16.mxu0 0
    %148 = vmatpush2.bf16.msra.mxu0 0
    %149 = vmatprep.mubr.bf16.mxu0 0
    %150 = vmatmul.mubr.bf16.gmra.mxu0 %v115
    %v151 = vpop.f32.mrf.mxu0
    %v152 = vadd.f32 %v102, %v151
    %v153 = vpop.f32.mrf.mxu0
    %v154 = vpop.f32.mrf.mxu0
    %v155 = vpop.f32.mrf.mxu0
    %156 = vdwg.mxu0
    %v157 = vld [vmem:[%s5] sm:$0x1]
    %v159 = vlaneseq
    %v160 = vshrl.u32 %v159, 7
    %v161 = vsub.s32 0, %v160
    %v162 = vrot.slane %v157, %v161
    %v164 = vadd.f32 %v152, %v162
    %v165 = vmax.f32 %v164, 0.0
    %v166 = vpack.c.bf16 %v165, %v165
    %v167 = vld [vmem:[%s6] sm:$0xf]
    %v168 = vld [vmem:[%s6 + $0x4] sm:$0xf]
    %v169 = vld [vmem:[%s6 + $0x8] sm:$0xf]
    %v170 = vld [vmem:[%s6 + $0xc] sm:$0xf]
    %v171 = vld [vmem:[%s6 + $0x10] sm:$0xf]
    %v172 = vld [vmem:[%s6 + $0x14] sm:$0xf]
    %v173 = vld [vmem:[%s7] sm:$0xf]
    %v175 = vsel %vm59, %v55, 0
    %v178 = vsel %vm63, %v173, 0
    %180 = vmatprep.subr.bf16.mxu0 0
    %181 = vmatpush1.bf16.msra.mxu0 0
    %182 = vmatprep.subr.bf16.mxu0 0
    %183 = vmatpush1.bf16.msra.mxu0 0
    %184 = vmatprep.subr.bf16.mxu0 0
    %185 = vmatpush1.bf16.msra.mxu0 0
    %186 = vmatprep.subr.bf16.mxu0 0
    %187 = vmatpush1.bf16.msra.mxu0 0
    %188 = vmatprep.subr.bf16.mxu0 0
    %189 = vmatpush1.bf16.msra.mxu0 0
    %190 = vmatprep.subr.bf16.mxu0 0
    %191 = vmatpush1.bf16.msra.mxu0 0
    %192 = vmatprep.subr.bf16.mxu0 0
    %193 = vmatpush1.bf16.msra.mxu0 0
    %194 = vmatprep.subr.bf16.mxu0 0
    %195 = vmatpush1.bf16.msra.mxu0 %v178
    %196 = vmatprep.subr.bf16.mxu0 0
    %197 = vmatpush2.bf16.msra.mxu0 0
    %198 = vmatprep.subr.bf16.mxu0 0
    %199 = vmatpush2.bf16.msra.mxu0 0
    %200 = vmatprep.subr.bf16.mxu0 0
    %201 = vmatpush2.bf16.msra.mxu0 0
    %202 = vmatprep.subr.bf16.mxu0 0
    %203 = vmatpush2.bf16.msra.mxu0 0
    %204 = vmatprep.subr.bf16.mxu0 0
    %205 = vmatpush2.bf16.msra.mxu0 0
    %206 = vmatprep.subr.bf16.mxu0 0
    %207 = vmatpush2.bf16.msra.mxu0 0
    %208 = vmatprep.subr.bf16.mxu0 0
    %209 = vmatpush2.bf16.msra.mxu0 0
    %210 = vmatprep.subr.bf16.mxu0 0
    %211 = vmatpush2.bf16.msra.mxu0 0
    %212 = vmatprep.mubr.bf16.mxu0 0
    %213 = vmatmul.mubr.bf16.gmra.mxu0 %v175
    %v214 = vpop.f32.mrf.mxu0
    %v215 = vadd.f32 0.0, %v214
    %v216 = vpop.f32.mrf.mxu0
    %v217 = vpop.f32.mrf.mxu0
    %v218 = vpop.f32.mrf.mxu0
    %219 = vdwg.mxu0
    %v226 = vunpack.c.l.b16 %v167
    %v227 = vunpack.c.l.b16 %v168
    %v228 = vunpack.c.l.b16 %v169
    %v229 = vunpack.c.l.b16 %v170
    %v230 = vunpack.c.l.b16 %v171
    %v231 = vunpack.c.l.b16 %v172
    %v232 = vpack.c.b16 %v227, %v226
    %v233 = vpack.c.b16 %v229, %v228
    %v234 = vpack.c.b16 %v231, %v230
    %vm238 = vcmask 392192
    %v240 = vsel %vm238, %v166, 0
    %242 = vmatprep.subr.bf16.mxu0 0
    %243 = vmatpush1.bf16.msra.mxu0 0
    %244 = vmatprep.subr.bf16.mxu0 0
    %245 = vmatpush1.bf16.msra.mxu0 0
    %246 = vmatprep.subr.bf16.mxu0 0
    %247 = vmatpush1.bf16.msra.mxu0 0
    %248 = vmatprep.subr.bf16.mxu0 0
    %249 = vmatpush1.bf16.msra.mxu0 0
    %250 = vmatprep.subr.bf16.mxu0 0
    %251 = vmatpush1.bf16.msra.mxu0 0
    %252 = vmatprep.subr.bf16.mxu0 0
    %253 = vmatpush1.bf16.msra.mxu0 %v234
    %254 = vmatprep.subr.bf16.mxu0 0
    %255 = vmatpush1.bf16.msra.mxu0 %v233
    %256 = vmatprep.subr.bf16.mxu0 0
    %257 = vmatpush1.bf16.msra.mxu0 %v232
    %258 = vmatprep.subr.bf16.mxu0 0
    %259 = vmatpush2.bf16.msra.mxu0 0
    %260 = vmatprep.subr.bf16.mxu0 0
    %261 = vmatpush2.bf16.msra.mxu0 0
    %262 = vmatprep.subr.bf16.mxu0 0
    %263 = vmatpush2.bf16.msra.mxu0 0
    %264 = vmatprep.subr.bf16.mxu0 0
    %265 = vmatpush2.bf16.msra.mxu0 0
    %266 = vmatprep.subr.bf16.mxu0 0
    %267 = vmatpush2.bf16.msra.mxu0 0
    %268 = vmatprep.subr.bf16.mxu0 0
    %269 = vmatpush2.bf16.msra.mxu0 0
    %270 = vmatprep.subr.bf16.mxu0 0
    %271 = vmatpush2.bf16.msra.mxu0 0
    %272 = vmatprep.subr.bf16.mxu0 0
    %273 = vmatpush2.bf16.msra.mxu0 0
    %274 = vmatprep.mubr.bf16.mxu0 0
    %275 = vmatmul.mubr.bf16.gmra.mxu0 %v240
    %v276 = vpop.f32.mrf.mxu0
    %v277 = vadd.f32 %v215, %v276
    %v278 = vpop.f32.mrf.mxu0
    %v279 = vpop.f32.mrf.mxu0
    %v280 = vpop.f32.mrf.mxu0
    %281 = vdwg.mxu0
    %v282 = vld [vmem:[%s8] sm:$0x1]
    %v284 = vlaneseq
    %v285 = vshrl.u32 %v284, 7
    %v286 = vsub.s32 0, %v285
    %v287 = vrot.slane %v282, %v286
    %v289 = vadd.f32 %v277, %v287
    %v290 = vmax.f32 %v289, 0.0
    %v291 = vpack.c.bf16 %v290, %v290
    %v292 = vld [vmem:[%s9] sm:$0xf]
    %v293 = vld [vmem:[%s9 + $0x4] sm:$0xf]
    %v294 = vld [vmem:[%s9 + $0x8] sm:$0xf]
    %v295 = vld [vmem:[%s9 + $0xc] sm:$0xf]
    %v296 = vld [vmem:[%s9 + $0x10] sm:$0xf]
    %v297 = vld [vmem:[%s9 + $0x14] sm:$0xf]
    %v298 = vld [vmem:[%s9 + $0x18] sm:$0xf]
    %v299 = vld [vmem:[%s9 + $0x1c] sm:$0xf]
    %v300 = vld [vmem:[%s10] sm:$0x1]
    %v302 = vlaneseq
    %v303 = vshrl.u32 %v302, 7
    %v304 = vsub.s32 0, %v303
    %v305 = vrot.slane %v300, %v304
    %v315 = vunpack.c.l.b16 %v292
    %v316 = vunpack.c.l.b16 %v293
    %v317 = vunpack.c.l.b16 %v294
    %v318 = vunpack.c.l.b16 %v295
    %v319 = vunpack.c.l.b16 %v296
    %v320 = vunpack.c.l.b16 %v297
    %v321 = vunpack.c.l.b16 %v298
    %v322 = vunpack.c.l.b16 %v299
    %v323 = vpack.c.b16 %v316, %v315
    %v324 = vpack.c.b16 %v318, %v317
    %v325 = vpack.c.b16 %v320, %v319
    %v326 = vpack.c.b16 %v322, %v321
    %vm331 = vcmask 523264
    %v333 = vsel %vm331, %v291, 0
    %335 = vmatprep.subr.bf16.mxu0 0
    %336 = vmatpush1.bf16.msra.mxu0 0
    %337 = vmatprep.subr.bf16.mxu0 0
    %338 = vmatpush1.bf16.msra.mxu0 0
    %339 = vmatprep.subr.bf16.mxu0 0
    %340 = vmatpush1.bf16.msra.mxu0 0
    %341 = vmatprep.subr.bf16.mxu0 0
    %342 = vmatpush1.bf16.msra.mxu0 0
    %343 = vmatprep.subr.bf16.mxu0 0
    %344 = vmatpush1.bf16.msra.mxu0 %v326
    %345 = vmatprep.subr.bf16.mxu0 0
    %346 = vmatpush1.bf16.msra.mxu0 %v325
    %347 = vmatprep.subr.bf16.mxu0 0
    %348 = vmatpush1.bf16.msra.mxu0 %v324
    %349 = vmatprep.subr.bf16.mxu0 0
    %350 = vmatpush1.bf16.msra.mxu0 %v323
    %351 = vmatprep.subr.bf16.mxu0 0
    %352 = vmatpush2.bf16.msra.mxu0 0
    %353 = vmatprep.subr.bf16.mxu0 0
    %354 = vmatpush2.bf16.msra.mxu0 0
    %355 = vmatprep.subr.bf16.mxu0 0
    %356 = vmatpush2.bf16.msra.mxu0 0
    %357 = vmatprep.subr.bf16.mxu0 0
    %358 = vmatpush2.bf16.msra.mxu0 0
    %359 = vmatprep.subr.bf16.mxu0 0
    %360 = vmatpush2.bf16.msra.mxu0 0
    %361 = vmatprep.subr.bf16.mxu0 0
    %362 = vmatpush2.bf16.msra.mxu0 0
    %363 = vmatprep.subr.bf16.mxu0 0
    %364 = vmatpush2.bf16.msra.mxu0 0
    %365 = vmatprep.subr.bf16.mxu0 0
    %366 = vmatpush2.bf16.msra.mxu0 0
    %367 = vmatprep.mubr.bf16.mxu0 0
    %368 = vmatmul.mubr.bf16.gmra.mxu0 %v333
    %v369 = vpop.f32.mrf.mxu0
    %v370 = vadd.f32 %v305, %v369
    %v371 = vpop.f32.mrf.mxu0
    %v372 = vpop.f32.mrf.mxu0
    %v373 = vpop.f32.mrf.mxu0
    %374 = vdwg.mxu0
    %375 = vst.msk [vmem:[#allocation3] sm:$0xff] %vm113, %v370
    %v376 = vld [vmem:[%s11] sm:$0xf]
    %v377 = vld [vmem:[%s11 + $0x4] sm:$0xf]
    %v378 = vld [vmem:[%s11 + $0x8] sm:$0xf]
    %v379 = vld [vmem:[%s11 + $0xc] sm:$0xf]
    %v380 = vld [vmem:[%s11 + $0x10] sm:$0xf]
    %v381 = vld [vmem:[%s11 + $0x14] sm:$0xf]
    %v382 = vld [vmem:[%s11 + $0x18] sm:$0xf]
    %v383 = vld [vmem:[%s11 + $0x1c] sm:$0xf]
    %v384 = vld [vmem:[#allocation2] sm:$0x1]
    %v386 = vlaneseq
    %v387 = vshrl.u32 %v386, 7
    %v388 = vsub.s32 0, %v387
    %v389 = vrot.slane %v384, %v388
    %v399 = vunpack.c.l.b16 %v376
    %v400 = vunpack.c.l.b16 %v377
    %v401 = vunpack.c.l.b16 %v378
    %v402 = vunpack.c.l.b16 %v379
    %v403 = vunpack.c.l.b16 %v380
    %v404 = vunpack.c.l.b16 %v381
    %v405 = vunpack.c.l.b16 %v382
    %v406 = vunpack.c.l.b16 %v383
    %v407 = vpack.c.b16 %v400, %v399
    %v408 = vpack.c.b16 %v402, %v401
    %v409 = vpack.c.b16 %v404, %v403
    %v410 = vpack.c.b16 %v406, %v405
    %415 = vmatprep.subr.bf16.mxu0 0
    %416 = vmatpush1.bf16.msra.mxu0 0
    %417 = vmatprep.subr.bf16.mxu0 0
    %418 = vmatpush1.bf16.msra.mxu0 0
    %419 = vmatprep.subr.bf16.mxu0 0
    %420 = vmatpush1.bf16.msra.mxu0 0
    %421 = vmatprep.subr.bf16.mxu0 0
    %422 = vmatpush1.bf16.msra.mxu0 0
    %423 = vmatprep.subr.bf16.mxu0 0
    %424 = vmatpush1.bf16.msra.mxu0 %v410
    %425 = vmatprep.subr.bf16.mxu0 0
    %426 = vmatpush1.bf16.msra.mxu0 %v409
    %427 = vmatprep.subr.bf16.mxu0 0
    %428 = vmatpush1.bf16.msra.mxu0 %v408
    %429 = vmatprep.subr.bf16.mxu0 0
    %430 = vmatpush1.bf16.msra.mxu0 %v407
    %431 = vmatprep.subr.bf16.mxu0 0
    %432 = vmatpush2.bf16.msra.mxu0 0
    %433 = vmatprep.subr.bf16.mxu0 0
    %434 = vmatpush2.bf16.msra.mxu0 0
    %435 = vmatprep.subr.bf16.mxu0 0
    %436 = vmatpush2.bf16.msra.mxu0 0
    %437 = vmatprep.subr.bf16.mxu0 0
    %438 = vmatpush2.bf16.msra.mxu0 0
    %439 = vmatprep.subr.bf16.mxu0 0
    %440 = vmatpush2.bf16.msra.mxu0 0
    %441 = vmatprep.subr.bf16.mxu0 0
    %442 = vmatpush2.bf16.msra.mxu0 0
    %443 = vmatprep.subr.bf16.mxu0 0
    %444 = vmatpush2.bf16.msra.mxu0 0
    %445 = vmatprep.subr.bf16.mxu0 0
    %446 = vmatpush2.bf16.msra.mxu0 0
    %447 = vmatprep.mubr.bf16.mxu0 0
    %448 = vmatmul.mubr.bf16.gmra.mxu0 %v333
    %v449 = vpop.f32.mrf.mxu0
    %v450 = vadd.f32 %v389, %v449
    %v451 = vpop.f32.mrf.mxu0
    %v452 = vpop.f32.mrf.mxu0
    %v453 = vpop.f32.mrf.mxu0
    %454 = vdwg.mxu0
    %vm455 = vcmask 7168
    %456 = vst.msk [vmem:[%s14] sm:$0xff] %vm455, %v450
    // Predicated region
    $region54: #{tpu_custom_call.1} parent=1 // pred_check
      _
    $region55: #{tpu_custom_call.1} parent=1 // pred_check_branch
      %458 = sbr.rel (0) target = $region57
    $region56: #{tpu_custom_call.1} parent=1 // pred_region
      %s460 = ssub.s32 128, 128
      %461 = vsyncadd [#allocation4], %s460
      %s463 = sshll.u32 [#allocation3], 4
      %s464 = int_to_ptr.vmem [resolvable:$true] %s463
      %466 = dma.vmem_to_hbm [thread:$0]  %s464, 128, %s13, [#allocation4]
    $region57: #{tpu_custom_call.1} parent=1 // pred_fallthru
      _
    // Predicated region
    $region58: #{tpu_custom_call.1} parent=1 // pred_check
      _
    $region59: #{tpu_custom_call.1} parent=1 // pred_check_branch
      %468 = sbr.rel (0) target = $region61
    $region60: #{tpu_custom_call.1} parent=1 // pred_region
      _
    $region61: #{tpu_custom_call.1} parent=1 // pred_fallthru
      _
    // Predicated region
    $region62: #{tpu_custom_call.1} parent=1 // pred_check
      _
    $region63: #{tpu_custom_call.1} parent=1 // pred_check_branch
      %470 = sbr.rel (0) target = $region65
    $region64: #{tpu_custom_call.1} parent=1 // pred_region
      %471 = dma.done [#allocation4], 128
    $region65: #{tpu_custom_call.1} parent=1 // pred_fallthru
      _
    // Predicated region
    $region66: #{tpu_custom_call.1} parent=1 // pred_check
      _
    $region67: #{tpu_custom_call.1} parent=1 // pred_check_branch
      %473 = sbr.rel (0) target = $region69
    $region68: #{tpu_custom_call.1} parent=1 // pred_region
      _
    $region69: #{tpu_custom_call.1} parent=1 // pred_fallthru
      _
    %474 = vsyncpa [#allocation4], 1

</llo_original>
